<compile_context>
chip_gen: v7x
topology: tpu7x:2x2x1
jax: 0.10.0
libtpu: 0.0.40
codegen_flags: <defaults>
</compile_context>

<pallas_src>
import functools

import jax
import jax.numpy as jnp
import numpy as np
from jax.experimental import pallas as pl
from jax.experimental.pallas import tpu as pltpu


def _round_up(x, m):
    return ((x + m - 1) // m) * m


def _pick_block(total, blk_max):
    """Largest lane block <= blk_max (multiple of 128, >=128) capped at ~half the problem so
    the grid has >=2 steps whenever possible (v7x has 2 TensorCores)."""
    half = _round_up((total + 1) // 2, 128)
    return max(128, min(blk_max, half))


# --------------------------------------------------------------------------
# Kernel 1: per-item geo self-attention, items on the lane axis.
#   per item n:  s = q_n @ emb_n.reshape(G, L) / sqrt(G); p = softmax(s); out_n = p @ emb_n
# The torch reshape(G, L) (row-major byte reinterpretation, NOT a transpose) is encoded in
# constant routing matrices so the gathered data is read once and every matmul streams the
# big item axis on the lanes.
# --------------------------------------------------------------------------
def _self_attn_kernel(e_ref, q_ref, repq_ref, sels_ref, repp_ref, selo_ref, o_ref, *,
                      scale):
    e_t = e_ref[...]                                                   # [L*G, Nblk]
    # q replicated onto every (g,l) slot it multiplies:  [L*G, Nblk]
    q_rep = jnp.dot(repq_ref[...], q_ref[...], preferred_element_type=jnp.float32)
    # scores: route each product to its score slot l  -> [L, Nblk]
    s = jnp.dot(sels_ref[...], q_rep * e_t, preferred_element_type=jnp.float32) * scale
    m = jnp.max(s, axis=0, keepdims=True)
    p = jnp.exp(s - m)
    p = p * pl.reciprocal(jnp.sum(p, axis=0, keepdims=True), approx=True)   # softmax over L
    # p replicated onto every (l,g) slot it multiplies:  [L*G, Nblk]
    p_rep = jnp.dot(repp_ref[...], p, preferred_element_type=jnp.float32)
    # output: route each product to its output slot g   -> [G, Nblk]  (lane-dense store)
    o_ref[...] = jnp.dot(selo_ref[...], p_rep * e_t,
                         preferred_element_type=jnp.float32)


def self_attention_pallas(table_in, table_out, near, *, nblk_max=2048):
    """Fused self-attention for both geo tables.
    table_in/table_out: [N, G]; near: [N, L] neighbour indices.
    Returns (a_sus, a_inf), each [N, G], matching torch's
      softmax(q @ emb.reshape(G, L) / sqrt(G)) @ emb  per table."""
    N, G = table_in.shape
    Nn, L = near.shape
    assert Nn == N and table_out.shape == (N, G)
    LG = L * G
    total = 2 * N                                  # both tables share one lane stream
    nblk = _pick_block(total, nblk_max)
    npad = _round_up(total, nblk)

    near_t = near.T                                                     # [L, N]
    tin_t = table_in.T                                                  # [G, N]
    tout_t = table_out.T                                                # [G, N]
    # gathered geo embeddings, item axis last: row i = g*L + l holds emb[n, l, g]
    e_all = jnp.concatenate([tin_t[:, near_t].reshape(LG, N),
                             tout_t[:, near_t].reshape(LG, N)], axis=1)  # [LG, 2N]
    q_all = jnp.concatenate([tin_t, tout_t], axis=1)                     # [G, 2N]
    e_all = jnp.pad(e_all, ((0, 0), (0, npad - total)))
    q_all = jnp.pad(q_all, ((0, 0), (0, npad - total)))

    # constant 0/1 routing matrices (encode the torch reshape semantics exactly)
    idx = np.arange(LG)
    a = idx % L                     # l such that e_all row i holds emb[n, a, b]
    b = idx // L                    # g
    j = a * G + b                   # row-major flat index of emb[n] held by row i
    repq = jnp.asarray((j // L)[:, None] == np.arange(G)[None, :], jnp.float32)  # [LG, G]
    sels = jnp.asarray(np.arange(L)[:, None] == (j % L)[None, :], jnp.float32)   # [L, LG]
    repp = jnp.asarray(a[:, None] == np.arange(L)[None, :], jnp.float32)         # [LG, L]
    selo = jnp.asarray(np.arange(G)[:, None] == b[None, :], jnp.float32)         # [G, LG]

    scale = 1.0 / float(np.sqrt(float(G)))
    kern = functools.partial(_self_attn_kernel, scale=scale)
    out_t = pl.pallas_call(
        kern,
        out_shape=jax.ShapeDtypeStruct((G, npad), jnp.float32),
        grid_spec=pltpu.PrefetchScalarGridSpec(
            num_scalar_prefetch=0,
            grid=(npad // nblk,),
            in_specs=[
                pl.BlockSpec((LG, nblk), lambda n: (0, n)),   # gathered geo embeddings
                pl.BlockSpec((G, nblk), lambda n: (0, n)),    # queries (both tables)
                pl.BlockSpec((LG, G), lambda n: (0, 0)),      # constants (fetched once)
                pl.BlockSpec((L, LG), lambda n: (0, 0)),
                pl.BlockSpec((LG, L), lambda n: (0, 0)),
                pl.BlockSpec((G, LG), lambda n: (0, 0)),
            ],
            out_specs=pl.BlockSpec((G, nblk), lambda n: (0, n)),
        ),
        compiler_params=pltpu.CompilerParams(dimension_semantics=("parallel",)),
    )(e_all, q_all, repq, sels, repp, selo)
    a_sus = out_t[:, :N].T                                              # [N, G] (ingoing)
    a_inf = out_t[:, N:total].T                                         # [N, G] (outgoing)
    return a_sus, a_inf


# --------------------------------------------------------------------------
# Kernel 2: attention network + geo term + sigmoid, Bblk batch elements per step,
# batch on the lane axis, block-diagonal matmuls for the whole MLP, lane-dense
# [1, Bblk] output row.
# --------------------------------------------------------------------------
def _rec_kernel(x_ref, hidx_ref, tidx_ref, u_ref, v_ref,
                w1bd_ref, b1col_ref, w2bd_ref, se_ref, out_ref, *, beta):
    x = x_ref[...]                                                    # [H*E, Bblk]  (hist*tgt)
    # attn_layer1 for all (batch, history) pairs at once (block-diag kron weight)
    h1 = jnp.dot(w1bd_ref[...], x, preferred_element_type=jnp.float32) + b1col_ref[...]
    h1 = jnp.maximum(h1, 0.0)                                         # ReLU (dropout = identity)
    h2 = jnp.dot(w2bd_ref[...], h1, preferred_element_type=jnp.float32)   # [H, Bblk]

    mask = (hidx_ref[...] != tidx_ref[...]).astype(jnp.float32)       # [H, Bblk]
    exp_a = jnp.exp(h2) * mask                                        # matches torch (no max-sub)
    exp_sum = jnp.sum(exp_a, axis=0, keepdims=True)                   # [1, Bblk]
    denom = jnp.exp(beta * jnp.log(exp_sum))                          # exp_sum ** beta
    attn = exp_a * pl.reciprocal(denom, approx=True)                  # [H, Bblk]

    # bmm(history*attn, target) == attn[b,h] * sum_e (hist*tgt)[b,h,e]
    d = jnp.dot(se_ref[...], x, preferred_element_type=jnp.float32)   # [H, Bblk]
    pred = jnp.sum(attn * d, axis=0, keepdims=True)                   # [1, Bblk]
    geo = jnp.sum(u_ref[...] * v_ref[...], axis=0, keepdims=True)     # [1, Bblk]
    out_ref[...] = jax.nn.sigmoid(pred + geo)                         # lane-dense row store


def recommendation_pallas(x, history, target, u, v, w1, b1, w2, beta, *, bblk_max=2048):
    """x = hist_emb * tgt_emb  [B, H, E];  u, v: [B, 2*G] (Lg-reduced) geo factors; -> [B]."""
    B, H, E = x.shape
    hidden = w1.shape[0]
    K2 = u.shape[1]
    bblk = _pick_block(B, bblk_max)
    bpad = _round_up(B, bblk)
    pad = bpad - B

    # transposed, padded, lane-dense inputs (batch on lanes)
    x_t = jnp.pad(x.transpose(1, 2, 0).reshape(H * E, B), ((0, 0), (0, pad)))
    hidx_t = jnp.pad(history.astype(jnp.int32).T, ((0, 0), (0, pad)))
    tidx_t = jnp.pad(target.astype(jnp.int32)[None, :], ((0, 0), (0, pad)),
                     constant_values=-1)          # padded cols get mask=1 -> exp_sum>0, no NaN
    u_t = jnp.pad(u.T, ((0, 0), (0, pad)))
    v_t = jnp.pad(v.T, ((0, 0), (0, pad)))

    # block-diagonal weights: the whole [B*H] MLP becomes two big lane-dense matmuls.
    eye_h = jnp.eye(H, dtype=jnp.float32)
    w1_bd = jnp.kron(eye_h, w1.astype(jnp.float32))                   # [H*hidden, H*E]
    w2_bd = jnp.kron(eye_h, w2.astype(jnp.float32))                   # [H, H*hidden]
    s_e = jnp.kron(eye_h, jnp.ones((1, E), jnp.float32))              # [H, H*E]
    b1_col = jnp.tile(b1.astype(jnp.float32), H).reshape(H * hidden, 1)

    kern = functools.partial(_rec_kernel, beta=float(beta))
    out = pl.pallas_call(
        kern,
        out_shape=jax.ShapeDtypeStruct((1, bpad), jnp.float32),
        grid_spec=pltpu.PrefetchScalarGridSpec(
            num_scalar_prefetch=0,
            grid=(bpad // bblk,),
            in_specs=[
                pl.BlockSpec((H * E, bblk), lambda i: (0, i)),        # hist*tgt (transposed)
                pl.BlockSpec((H, bblk), lambda i: (0, i)),            # history indices
                pl.BlockSpec((1, bblk), lambda i: (0, i)),            # target index
                pl.BlockSpec((K2, bblk), lambda i: (0, i)),           # geo factor u (Lg-reduced)
                pl.BlockSpec((K2, bblk), lambda i: (0, i)),           # geo factor v (no Lg bcast)
                pl.BlockSpec((H * hidden, H * E), lambda i: (0, 0)),  # block-diag W1
                pl.BlockSpec((H * hidden, 1), lambda i: (0, 0)),      # bias column
                pl.BlockSpec((H, H * hidden), lambda i: (0, 0)),      # block-diag W2
                pl.BlockSpec((H, H * E), lambda i: (0, 0)),           # per-history sum matrix
            ],
            out_specs=pl.BlockSpec((1, bblk), lambda i: (0, i)),
        ),
        compiler_params=pltpu.CompilerParams(dimension_semantics=("parallel",)),
    )(x_t, hidx_t, tidx_t, u_t, v_t, w1_bd, b1_col, w2_bd, s_e)
    return out[0, :B]                                                 # [B]


# --------------------------------------------------------------------------
# Model glue: parameter init + full forward (embedding gathers / layout plumbing in JAX)
# --------------------------------------------------------------------------
def init_params(key, item_num, int_embed_size, geo_embed_size, hidden_size):
    N = item_num + 1                                # +1 padding row
    ks = jax.random.split(key, 6)

    def xavier(k, shape):
        fan_out, fan_in = shape[0], shape[1]
        limit = np.sqrt(6.0 / (fan_in + fan_out))
        return jax.random.uniform(k, shape, jnp.float32, -limit, limit)

    return {
        "embed_ingoing": xavier(ks[0], (N, geo_embed_size)).at[N - 1].set(0.0),
        "embed_outgoing": xavier(ks[1], (N, geo_embed_size)).at[N - 1].set(0.0),
        "embed_history": xavier(ks[2], (N, int_embed_size)).at[N - 1].set(0.0),
        "embed_target": xavier(ks[3], (N, int_embed_size)).at[N - 1].set(0.0),
        "w1": xavier(ks[4], (hidden_size, int_embed_size)),   # attn_layer1.weight
        "b1": jnp.zeros((hidden_size,), jnp.float32),         # attn_layer1.bias (zeroed)
        "w2": xavier(ks[5], (1, hidden_size)),                 # attn_layer2.weight (no bias)
    }


def forward_pallas(params, history, target, near_pois, ptoc, ctof, beta):
    N, G = params["embed_ingoing"].shape
    # append padding row (matches np.append in the torch forward)
    pad_row = jnp.full((1, near_pois.shape[1]), N - 1, dtype=near_pois.dtype)
    near = jnp.concatenate([near_pois, pad_row], axis=0)       # [N, L]

    # fused self-attention over both geo tables (single pallas_call)
    a_sus, a_inf = self_attention_pallas(params["embed_ingoing"],
                                         params["embed_outgoing"], near)

    hist_emb = params["embed_history"][history]                # [B, H, E]
    tgt_emb = params["embed_target"][target]                   # [B, E]
    B, H, E = hist_emb.shape

    # the kernel only ever needs hist*tgt (both for the MLP input and the bmm reduce)
    x = hist_emb * tgt_emb[:, None, :]                         # [B, H, E]

    # geo term, pre-reduced over the Lg neighbour axis (a_sus[target]/a_inf[target] are
    # constant over Lg, so sum_{l,g} u*v == sum_g (sum_l u) * v):
    u = jnp.concatenate([jnp.sum(a_inf[ptoc], axis=1),
                         jnp.sum(a_sus[ctof], axis=1)], axis=1)        # [B, 2*G]
    v = jnp.concatenate([a_sus[target], a_inf[target]], axis=1)        # [B, 2*G]

    return recommendation_pallas(x, history, target, u, v,
                                 params["w1"], params["b1"], params["w2"], beta)


def forward_reference(params, history, target, near_pois, ptoc, ctof, beta):
    """Pure-JAX mirror of the PyTorch forward, for correctness check."""
    N, G = params["embed_ingoing"].shape
    pad_row = jnp.full((1, near_pois.shape[1]), N - 1, dtype=near_pois.dtype)
    near = jnp.concatenate([near_pois, pad_row], axis=0)

    def self_attn(q_w, emb):
        L = emb.shape[1]
        q = q_w.reshape(N, 1, G)
        k = emb.reshape(N, G, L)
        s = jnp.einsum("nog,ngl->nol", q, k) / jnp.sqrt(jnp.float32(G))
        p = jax.nn.softmax(s, axis=-1)
        return jnp.einsum("nol,nlg->nog", p, emb)[:, 0, :]

    t1 = params["embed_ingoing"][near]
    t2 = params["embed_outgoing"][near]
    a_sus = self_attn(params["embed_ingoing"], t1)
    a_inf = self_attn(params["embed_outgoing"], t2)

    hist = params["embed_history"][history]
    tgt = params["embed_target"][target]
    B = tgt.shape[0]
    tgt_r = tgt.reshape(B, 1, -1)
    input_item = hist * tgt_r
    input_geo = (a_inf[ptoc] * a_sus[target].reshape(B, 1, -1)
                 + a_sus[ctof] * a_inf[target].reshape(B, 1, -1))

    h1 = jax.nn.relu(input_item @ params["w1"].T + params["b1"])
    h2 = (h1 @ params["w2"].T)[..., 0]
    exp_a = jnp.exp(h2) * (history != target.reshape(B, 1)).astype(jnp.float32)
    exp_sum = jnp.sum(exp_a, axis=-1) ** beta
    attn = (exp_a.T / exp_sum).T.reshape(B, -1, 1)
    result = hist * attn
    pred = jnp.sum(jnp.einsum("bhe,be->bh", result, tgt), axis=-1)
    geo = jnp.sum(jnp.sum(input_geo, axis=-1), axis=-1)
    return jax.nn.sigmoid(pred + geo)


if __name__ == "__main__":
    # small, forward-consistent shapes
    item_num = 15           # -> N = item_num + 1 = 16 rows (incl. padding)
    int_embed_size = 8      # E
    geo_embed_size = 8      # G
    hidden_size = 32
    beta = 0.5
    B, H, L, Lg = 2, 8, 4, 4
    N = item_num + 1

    root = jax.random.PRNGKey(0)
    kp, kh, kt, kn, k1, k2 = jax.random.split(root, 6)

    params = init_params(kp, item_num, int_embed_size, geo_embed_size, hidden_size)

    history = jax.random.randint(kh, (B, H), 0, N, dtype=jnp.int32)       # may include pad idx
    target = jax.random.randint(kt, (B,), 0, item_num, dtype=jnp.int32)
    near_pois = jax.random.randint(kn, (N - 1, L), 0, N, dtype=jnp.int32)  # one row appended in fwd
    ptoc = jax.random.randint(k1, (B, Lg), 0, N, dtype=jnp.int32)
    ctof = jax.random.randint(k2, (B, Lg), 0, N, dtype=jnp.int32)

    out = forward_pallas(params, history, target, near_pois, ptoc, ctof, beta)
    out = jax.block_until_ready(out)

    ref = forward_reference(params, history, target, near_pois, ptoc, ctof, beta)
    np.testing.assert_allclose(np.asarray(out), np.asarray(ref), rtol=2e-3, atol=2e-3)

    print("KERNEL_OK")
</pallas_src>

<mosaic_0001>
module attributes {stable_mosaic.version = 11 : i64} {
  func.func @_self_attn_kernel(%arg0: i32, %arg1: memref<32x128xf32, #tpu.memory_space<vmem>>, %arg2: memref<8x128xf32, #tpu.memory_space<vmem>>, %arg3: memref<32x8xf32, #tpu.memory_space<vmem>>, %arg4: memref<4x32xf32, #tpu.memory_space<vmem>>, %arg5: memref<32x4xf32, #tpu.memory_space<vmem>>, %arg6: memref<8x32xf32, #tpu.memory_space<vmem>>, %arg7: memref<8x128xf32, #tpu.memory_space<vmem>>) attributes {dimension_semantics = [#tpu.dimension_semantics<parallel>], iteration_bounds = array<i64: 1>, scalar_prefetch = 0 : i64, scratch_operands = 0 : i64, tpu.core_type = #tpu.core_type<tc>, window_params = [{transform_indices = @transform_0, window_bounds = array<i64: 32, 128>}, {transform_indices = @transform_1, window_bounds = array<i64: 8, 128>}, {pipeline_mode = #tpu.pipeline_mode<synchronous>, transform_indices = @transform_2, window_bounds = array<i64: 32, 8>}, {pipeline_mode = #tpu.pipeline_mode<synchronous>, transform_indices = @transform_3, window_bounds = array<i64: 4, 32>}, {pipeline_mode = #tpu.pipeline_mode<synchronous>, transform_indices = @transform_4, window_bounds = array<i64: 32, 4>}, {pipeline_mode = #tpu.pipeline_mode<synchronous>, transform_indices = @transform_5, window_bounds = array<i64: 8, 32>}, {transform_indices = @transform_6, window_bounds = array<i64: 8, 128>}]} {
    %c0 = arith.constant 0 : index
    %c0_0 = arith.constant 0 : index
    %0 = vector.load %arg1[%c0, %c0_0] : memref<32x128xf32, #tpu.memory_space<vmem>>, vector<32x128xf32>
    %c0_1 = arith.constant 0 : index
    %c0_2 = arith.constant 0 : index
    %1 = vector.load %arg3[%c0_1, %c0_2] : memref<32x8xf32, #tpu.memory_space<vmem>>, vector<32x8xf32>
    %c0_3 = arith.constant 0 : index
    %c0_4 = arith.constant 0 : index
    %2 = vector.load %arg2[%c0_3, %c0_4] : memref<8x128xf32, #tpu.memory_space<vmem>>, vector<8x128xf32>
    %cst = arith.constant dense<0.000000e+00> : vector<32x128xf32>
    %3 = tpu.matmul %1, %2, %cst {dimension_numbers = #tpu.dot_dimension_numbers<[1], [0], [0], [1], [0, 0, 1, 1], [], []>} : vector<32x8xf32>, vector<8x128xf32>, vector<32x128xf32> -> vector<32x128xf32>
    %c0_5 = arith.constant 0 : index
    %c0_6 = arith.constant 0 : index
    %4 = vector.load %arg4[%c0_5, %c0_6] : memref<4x32xf32, #tpu.memory_space<vmem>>, vector<4x32xf32>
    %5 = arith.mulf %3, %0 : vector<32x128xf32>
    %cst_7 = arith.constant dense<0.000000e+00> : vector<4x128xf32>
    %6 = tpu.matmul %4, %5, %cst_7 {dimension_numbers = #tpu.dot_dimension_numbers<[1], [0], [0], [1], [0, 0, 1, 1], [], []>} : vector<4x32xf32>, vector<32x128xf32>, vector<4x128xf32> -> vector<4x128xf32>
    %cst_8 = arith.constant 0.353553385 : f32
    %7 = vector.broadcast %cst_8 : f32 to vector<4x128xf32>
    %8 = arith.mulf %6, %7 : vector<4x128xf32>
    %cst_9 = arith.constant dense<0xFF800000> : vector<128xf32>
    %9 = vector.multi_reduction <maximumf>, %8, %cst_9 [0] : vector<4x128xf32> to vector<128xf32>
    %10 = vector.shape_cast %9 : vector<128xf32> to vector<1x128xf32>
    %11 = vector.broadcast %10 : vector<1x128xf32> to vector<4x128xf32>
    %12 = arith.subf %8, %11 : vector<4x128xf32>
    %13 = math.exp %12 : vector<4x128xf32>
    %cst_10 = arith.constant dense<0.000000e+00> : vector<128xf32>
    %14 = vector.multi_reduction <add>, %13, %cst_10 [0] : vector<4x128xf32> to vector<128xf32>
    %15 = vector.shape_cast %14 : vector<128xf32> to vector<1x128xf32>
    %16 = tpu.reciprocal %15 {approx = true} : vector<1x128xf32> -> vector<1x128xf32>
    %17 = vector.broadcast %16 : vector<1x128xf32> to vector<4x128xf32>
    %18 = arith.mulf %13, %17 : vector<4x128xf32>
    %c0_11 = arith.constant 0 : index
    %c0_12 = arith.constant 0 : index
    %19 = vector.load %arg5[%c0_11, %c0_12] : memref<32x4xf32, #tpu.memory_space<vmem>>, vector<32x4xf32>
    %cst_13 = arith.constant dense<0.000000e+00> : vector<32x128xf32>
    %20 = tpu.matmul %19, %18, %cst_13 {dimension_numbers = #tpu.dot_dimension_numbers<[1], [0], [0], [1], [0, 0, 1, 1], [], []>} : vector<32x4xf32>, vector<4x128xf32>, vector<32x128xf32> -> vector<32x128xf32>
    %c0_14 = arith.constant 0 : index
    %c0_15 = arith.constant 0 : index
    %21 = vector.load %arg6[%c0_14, %c0_15] : memref<8x32xf32, #tpu.memory_space<vmem>>, vector<8x32xf32>
    %22 = arith.mulf %20, %0 : vector<32x128xf32>
    %cst_16 = arith.constant dense<0.000000e+00> : vector<8x128xf32>
    %23 = tpu.matmul %21, %22, %cst_16 {dimension_numbers = #tpu.dot_dimension_numbers<[1], [0], [0], [1], [0, 0, 1, 1], [], []>} : vector<8x32xf32>, vector<32x128xf32>, vector<8x128xf32> -> vector<8x128xf32>
    %c0_17 = arith.constant 0 : index
    %c0_18 = arith.constant 0 : index
    %24 = vector.load %arg7[%c0_17, %c0_18] : memref<8x128xf32, #tpu.memory_space<vmem>>, vector<8x128xf32>
    tpu.vector_store %arg7[%c0_17, %c0_18], %23 {strides = array<i32>} : memref<8x128xf32, #tpu.memory_space<vmem>>, vector<8x128xf32>,
    return
  }
  func.func @transform_0(%arg0: i32) -> (i32, i32) {
    %c0_i32 = arith.constant 0 : i32
    %c0_i32_0 = arith.constant 0 : i32
    return %c0_i32, %arg0 : i32, i32
  }
  func.func @transform_1(%arg0: i32) -> (i32, i32) {
    %c0_i32 = arith.constant 0 : i32
    %c0_i32_0 = arith.constant 0 : i32
    return %c0_i32, %arg0 : i32, i32
  }
  func.func @transform_2(%arg0: i32) -> (i32, i32) {
    %c0_i32 = arith.constant 0 : i32
    %c0_i32_0 = arith.constant 0 : i32
    %c0_i32_1 = arith.constant 0 : i32
    return %c0_i32, %c0_i32_0 : i32, i32
  }
  func.func @transform_3(%arg0: i32) -> (i32, i32) {
    %c0_i32 = arith.constant 0 : i32
    %c0_i32_0 = arith.constant 0 : i32
    %c0_i32_1 = arith.constant 0 : i32
    return %c0_i32, %c0_i32_0 : i32, i32
  }
  func.func @transform_4(%arg0: i32) -> (i32, i32) {
    %c0_i32 = arith.constant 0 : i32
    %c0_i32_0 = arith.constant 0 : i32
    %c0_i32_1 = arith.constant 0 : i32
    return %c0_i32, %c0_i32_0 : i32, i32
  }
  func.func @transform_5(%arg0: i32) -> (i32, i32) {
    %c0_i32 = arith.constant 0 : i32
    %c0_i32_0 = arith.constant 0 : i32
    %c0_i32_1 = arith.constant 0 : i32
    return %c0_i32, %c0_i32_0 : i32, i32
  }
  func.func @transform_6(%arg0: i32) -> (i32, i32) {
    %c0_i32 = arith.constant 0 : i32
    %c0_i32_0 = arith.constant 0 : i32
    return %c0_i32, %arg0 : i32, i32
  }
}

</mosaic_0001>

<llo_original>
// kernel: tpu_custom_call.1
$region0: #{tpu_custom_call.1}
  #allocation0 [shape = 'u32[]', space=smem, size = 0x4, offset = 0x4, fixed_abs, tag = 'smem constant byte address 0x4 - core index']
  #allocation1 [shape = 'u32[144,128]{1,0:T(1,128)}', space=vmem, size = 0x12000, scoped, tag = 'internal scratch']
  %s0 = inlined_call_operand.vmem [shape: f32[32,128], index: 0, kind: input, shape index: {}]
  %s1 = inlined_call_operand.vmem [shape: f32[8,128], index: 1, kind: input, shape index: {}]
  %s2 = inlined_call_operand.vmem [shape: f32[32,8], index: 2, kind: input, shape index: {}]
  %s3 = inlined_call_operand.vmem [shape: f32[4,32], index: 3, kind: input, shape index: {}]
  %s4 = inlined_call_operand.vmem [shape: f32[32,4], index: 4, kind: input, shape index: {}]
  %s5 = inlined_call_operand.vmem [shape: f32[8,32], index: 5, kind: input, shape index: {}]
  %s6 = inlined_call_operand.hbm [shape: f32[8,128], index: 6, kind: output, shape index: {}]
  %s7 = sld [smem:[#allocation0]]
  $region34: #{tpu_custom_call.1} parent=0
    _
  %s9 = ssub.s32 1, %s7
  %s10 = scalar_select 0, %s9, %s7
  $region1: #{tpu_custom_call.1} parent=0
    #allocation2 [shape = 'u8[4096]{0}', space=vmem, size = 0x1000, scoped, tag = 'output window, operand 0, single buffered']
    #allocation3 [shape = 's32[1]{0}', space=sflag, size = 0x4, scoped, tag = 'scoped memory for tpu_custom_call.1']
    %11 = vsyncpa [#allocation3], 0
    // Predicated region
    $region2: #{tpu_custom_call.1} parent=1 // pred_check
      _
    $region3: #{tpu_custom_call.1} parent=1 // pred_check_branch
      %13 = sbr.rel (0) target = $region5
    $region4: #{tpu_custom_call.1} parent=1 // pred_region
      _
    $region5: #{tpu_custom_call.1} parent=1 // pred_fallthru
      _
    // Predicated region
    $region6: #{tpu_custom_call.1} parent=1 // pred_check
      _
    $region7: #{tpu_custom_call.1} parent=1 // pred_check_branch
      %15 = sbr.rel (0) target = $region9
    $region8: #{tpu_custom_call.1} parent=1 // pred_region
      _
    $region9: #{tpu_custom_call.1} parent=1 // pred_fallthru
      _
    // Predicated region
    $region10: #{tpu_custom_call.1} parent=1 // pred_check
      _
    $region11: #{tpu_custom_call.1} parent=1 // pred_check_branch
      %17 = sbr.rel (0) target = $region13
    $region12: #{tpu_custom_call.1} parent=1 // pred_region
      _
    $region13: #{tpu_custom_call.1} parent=1 // pred_fallthru
      _
    // Predicated region
    $region14: #{tpu_custom_call.1} parent=1 // pred_check
      _
    $region15: #{tpu_custom_call.1} parent=1 // pred_check_branch
      %19 = sbr.rel (0) target = $region17
    $region16: #{tpu_custom_call.1} parent=1 // pred_region
      _
    $region17: #{tpu_custom_call.1} parent=1 // pred_fallthru
      _
    // Predicated region
    $region18: #{tpu_custom_call.1} parent=1 // pred_check
      _
    $region19: #{tpu_custom_call.1} parent=1 // pred_check_branch
      %21 = sbr.rel (0) target = $region21
    $region20: #{tpu_custom_call.1} parent=1 // pred_region
      _
    $region21: #{tpu_custom_call.1} parent=1 // pred_fallthru
      _
    // Predicated region
    $region22: #{tpu_custom_call.1} parent=1 // pred_check
      _
    $region23: #{tpu_custom_call.1} parent=1 // pred_check_branch
      %23 = sbr.rel (0) target = $region25
    $region24: #{tpu_custom_call.1} parent=1 // pred_region
      _
    $region25: #{tpu_custom_call.1} parent=1 // pred_fallthru
      _
    %v24 = vld [vmem:[%s0] sm:$0xff]
    %v25 = vld [vmem:[%s0 + $0x8] sm:$0xff]
    %v26 = vld [vmem:[%s0 + $0x10] sm:$0xff]
    %v27 = vld [vmem:[%s0 + $0x18] sm:$0xff]
    %v28 = vld [vmem:[%s2] sm:$0xff]
    %v29 = vld [vmem:[%s2 + $0x8] sm:$0xff]
    %v30 = vld [vmem:[%s2 + $0x10] sm:$0xff]
    %v31 = vld [vmem:[%s2 + $0x18] sm:$0xff]
    %v32 = vld [vmem:[%s1] sm:$0xff]
    %vm33 = vcmask 64512
    %v35 = vsel %vm33, %v28, 0
    %v38 = vsel %vm33, %v29, 0
    %v41 = vsel %vm33, %v30, 0
    %v44 = vsel %vm33, %v31, 0
    %46 = vmatprep.subr.mxu0 0.0
    %47 = vmatpush1.msra.mxu0 %v32
    %48 = vmatprep.subr.mxu0 0.0
    %49 = vmatpush1.msra.mxu0 0.0
    %50 = vmatprep.subr.mxu0 0.0
    %51 = vmatpush1.msra.mxu0 0.0
    %52 = vmatprep.subr.mxu0 0.0
    %53 = vmatpush1.msra.mxu0 0.0
    %54 = vmatprep.subr.mxu0 0.0
    %55 = vmatpush1.msra.mxu0 0.0
    %56 = vmatprep.subr.mxu0 0.0
    %57 = vmatpush1.msra.mxu0 0.0
    %58 = vmatprep.subr.mxu0 0.0
    %59 = vmatpush1.msra.mxu0 0.0
    %60 = vmatprep.subr.mxu0 0.0
    %61 = vmatpush1.msra.mxu0 0.0
    %62 = vmatprep.subr.mxu0 0.0
    %63 = vmatpush1.msra.mxu0 0.0
    %64 = vmatprep.subr.mxu0 0.0
    %65 = vmatpush1.msra.mxu0 0.0
    %66 = vmatprep.subr.mxu0 0.0
    %67 = vmatpush1.msra.mxu0 0.0
    %68 = vmatprep.subr.mxu0 0.0
    %69 = vmatpush1.msra.mxu0 0.0
    %70 = vmatprep.subr.mxu0 0.0
    %71 = vmatpush1.msra.mxu0 0.0
    %72 = vmatprep.subr.mxu0 0.0
    %73 = vmatpush1.msra.mxu0 0.0
    %74 = vmatprep.subr.mxu0 0.0
    %75 = vmatpush1.msra.mxu0 0.0
    %76 = vmatprep.subr.mxu0 0.0
    %77 = vmatpush1.msra.mxu0 0.0
    %78 = vmatprep.subr.mxu0 0.0
    %79 = vmatpush1.msra.mxu0 0.0
    %80 = vmatprep.subr.mxu0 0.0
    %81 = vmatpush1.msra.mxu0 0.0
    %82 = vmatprep.subr.mxu0 0.0
    %83 = vmatpush1.msra.mxu0 0.0
    %84 = vmatprep.subr.mxu0 0.0
    %85 = vmatpush1.msra.mxu0 0.0
    %86 = vmatprep.subr.mxu0 0.0
    %87 = vmatpush1.msra.mxu0 0.0
    %88 = vmatprep.subr.mxu0 0.0
    %89 = vmatpush1.msra.mxu0 0.0
    %90 = vmatprep.subr.mxu0 0.0
    %91 = vmatpush1.msra.mxu0 0.0
    %92 = vmatprep.subr.mxu0 0.0
    %93 = vmatpush1.msra.mxu0 0.0
    %94 = vmatprep.subr.mxu0 0.0
    %95 = vmatpush1.msra.mxu0 0.0
    %96 = vmatprep.subr.mxu0 0.0
    %97 = vmatpush1.msra.mxu0 0.0
    %98 = vmatprep.subr.mxu0 0.0
    %99 = vmatpush1.msra.mxu0 0.0
    %100 = vmatprep.subr.mxu0 0.0
    %101 = vmatpush1.msra.mxu0 0.0
    %102 = vmatprep.subr.mxu0 0.0
    %103 = vmatpush1.msra.mxu0 0.0
    %104 = vmatprep.subr.mxu0 0.0
    %105 = vmatpush1.msra.mxu0 0.0
    %106 = vmatprep.subr.mxu0 0.0
    %107 = vmatpush1.msra.mxu0 0.0
    %108 = vmatprep.subr.mxu0 0.0
    %109 = vmatpush1.msra.mxu0 0.0
    %110 = vmatprep.mubr.f32.mxu0 0.0
    %111 = vmatmul.mubr.f32.gmra.mrb[0].mxu0 %v35
    %v112 = vpop.f32.mrb[0].mxu0
    %v113 = vadd.f32 0.0, %v112
    %v114 = vpop.f32.mrb[0].mxu0
    %115 = vmatprep.mubr.f32.mxu0 0.0
    %116 = vmatmul.mubr.f32.gmra.mrb[0].mxu0 %v38
    %v117 = vpop.f32.mrb[0].mxu0
    %v118 = vadd.f32 0.0, %v117
    %v119 = vpop.f32.mrb[0].mxu0
    %120 = vmatprep.mubr.f32.mxu0 0.0
    %121 = vmatmul.mubr.f32.gmra.mrb[0].mxu0 %v41
    %v122 = vpop.f32.mrb[0].mxu0
    %v123 = vadd.f32 0.0, %v122
    %v124 = vpop.f32.mrb[0].mxu0
    %125 = vmatprep.mubr.f32.mxu0 0.0
    %126 = vmatmul.mubr.f32.gmra.mrb[0].mxu0 %v44
    %v127 = vpop.f32.mrb[0].mxu0
    %v128 = vadd.f32 0.0, %v127
    %v129 = vpop.f32.mrb[0].mxu0
    %130 = vdwg.mxu0
    %v131 = vld [vmem:[%s3] sm:$0xf]
    %v132 = vmul.f32 %v113, %v24
    %v133 = vmul.f32 %v118, %v25
    %v134 = vmul.f32 %v123, %v26
    %v135 = vmul.f32 %v128, %v27
    %vm136 = vcmask 261120
    %v138 = vsel %vm136, %v131, 0
    %140 = vmatprep.subr.mxu0 0.0
    %141 = vmatpush1.msra.mxu0 %v132
    %142 = vmatprep.subr.mxu0 0.0
    %143 = vmatpush1.msra.mxu0 %v133
    %144 = vmatprep.subr.mxu0 0.0
    %145 = vmatpush1.msra.mxu0 %v134
    %146 = vmatprep.subr.mxu0 0.0
    %147 = vmatpush1.msra.mxu0 %v135
    %148 = vmatprep.subr.mxu0 0.0
    %149 = vmatpush1.msra.mxu0 0.0
    %150 = vmatprep.subr.mxu0 0.0
    %151 = vmatpush1.msra.mxu0 0.0
    %152 = vmatprep.subr.mxu0 0.0
    %153 = vmatpush1.msra.mxu0 0.0
    %154 = vmatprep.subr.mxu0 0.0
    %155 = vmatpush1.msra.mxu0 0.0
    %156 = vmatprep.subr.mxu0 0.0
    %157 = vmatpush1.msra.mxu0 0.0
    %158 = vmatprep.subr.mxu0 0.0
    %159 = vmatpush1.msra.mxu0 0.0
    %160 = vmatprep.subr.mxu0 0.0
    %161 = vmatpush1.msra.mxu0 0.0
    %162 = vmatprep.subr.mxu0 0.0
    %163 = vmatpush1.msra.mxu0 0.0
    %164 = vmatprep.subr.mxu0 0.0
    %165 = vmatpush1.msra.mxu0 0.0
    %166 = vmatprep.subr.mxu0 0.0
    %167 = vmatpush1.msra.mxu0 0.0
    %168 = vmatprep.subr.mxu0 0.0
    %169 = vmatpush1.msra.mxu0 0.0
    %170 = vmatprep.subr.mxu0 0.0
    %171 = vmatpush1.msra.mxu0 0.0
    %172 = vmatprep.subr.mxu0 0.0
    %173 = vmatpush1.msra.mxu0 0.0
    %174 = vmatprep.subr.mxu0 0.0
    %175 = vmatpush1.msra.mxu0 0.0
    %176 = vmatprep.subr.mxu0 0.0
    %177 = vmatpush1.msra.mxu0 0.0
    %178 = vmatprep.subr.mxu0 0.0
    %179 = vmatpush1.msra.mxu0 0.0
    %180 = vmatprep.subr.mxu0 0.0
    %181 = vmatpush1.msra.mxu0 0.0
    %182 = vmatprep.subr.mxu0 0.0
    %183 = vmatpush1.msra.mxu0 0.0
    %184 = vmatprep.subr.mxu0 0.0
    %185 = vmatpush1.msra.mxu0 0.0
    %186 = vmatprep.subr.mxu0 0.0
    %187 = vmatpush1.msra.mxu0 0.0
    %188 = vmatprep.subr.mxu0 0.0
    %189 = vmatpush1.msra.mxu0 0.0
    %190 = vmatprep.subr.mxu0 0.0
    %191 = vmatpush1.msra.mxu0 0.0
    %192 = vmatprep.subr.mxu0 0.0
    %193 = vmatpush1.msra.mxu0 0.0
    %194 = vmatprep.subr.mxu0 0.0
    %195 = vmatpush1.msra.mxu0 0.0
    %196 = vmatprep.subr.mxu0 0.0
    %197 = vmatpush1.msra.mxu0 0.0
    %198 = vmatprep.subr.mxu0 0.0
    %199 = vmatpush1.msra.mxu0 0.0
    %200 = vmatprep.subr.mxu0 0.0
    %201 = vmatpush1.msra.mxu0 0.0
    %202 = vmatprep.subr.mxu0 0.0
    %203 = vmatpush1.msra.mxu0 0.0
    %204 = vmatprep.mubr.f32.mxu0 0.0
    %205 = vmatmul.mubr.f32.gmra.mrb[0].mxu0 %v138
    %v206 = vpop.f32.mrb[0].mxu0
    %v207 = vadd.f32 0.0, %v206
    %v208 = vpop.f32.mrb[0].mxu0
    %209 = vdwg.mxu0
    %v210 = vmul.f32 %v207, 0.35355338
    %vm211 = vcmask 1043456
    %v212 = vsel %vm211, %v210, -inf
    %v213 = vrot.slane %v212, 4
    %v214 = vmax.f32 %v212, %v213
    %v215 = vrot.slane %v214, 2
    %v216 = vmax.f32 %v214, %v215
    %v217 = vrot.slane %v216, 1
    %v218 = vmax.f32 %v216, %v217
    %v219 = vsub.f32 %v210, %v218
    %v220 = vmul.f32 %v219, 1.442695
    %v221 = vpow.pop %v220
    %v222 = vsel %vm211, %v221, 0.0
    %v223 = vrot.slane %v222, 4
    %v224 = vadd.f32 %v222, %v223
    %v225 = vrot.slane %v224, 2
    %v226 = vadd.f32 %v224, %v225
    %v227 = vrot.slane %v226, 1
    %v228 = vadd.f32 %v226, %v227
    %v229 = vrcp.pop %v228
    %v230 = vmul.f32 %v221, %v229
    %v231 = vld [vmem:[%s4] sm:$0xff]
    %v232 = vld [vmem:[%s4 + $0x8] sm:$0xff]
    %v233 = vld [vmem:[%s4 + $0x10] sm:$0xff]
    %v234 = vld [vmem:[%s4 + $0x18] sm:$0xff]
    %vm235 = vcmask 31744
    %v237 = vsel %vm235, %v231, 0
    %v240 = vsel %vm235, %v232, 0
    %v243 = vsel %vm235, %v233, 0
    %v246 = vsel %vm235, %v234, 0
    %v249 = vsel %vm211, %v230, 0
    %251 = vmatprep.subr.mxu0 0.0
    %252 = vmatpush1.msra.mxu0 %v249
    %253 = vmatprep.subr.mxu0 0.0
    %254 = vmatpush1.msra.mxu0 0.0
    %255 = vmatprep.subr.mxu0 0.0
    %256 = vmatpush1.msra.mxu0 0.0
    %257 = vmatprep.subr.mxu0 0.0
    %258 = vmatpush1.msra.mxu0 0.0
    %259 = vmatprep.subr.mxu0 0.0
    %260 = vmatpush1.msra.mxu0 0.0
    %261 = vmatprep.subr.mxu0 0.0
    %262 = vmatpush1.msra.mxu0 0.0
    %263 = vmatprep.subr.mxu0 0.0
    %264 = vmatpush1.msra.mxu0 0.0
    %265 = vmatprep.subr.mxu0 0.0
    %266 = vmatpush1.msra.mxu0 0.0
    %267 = vmatprep.subr.mxu0 0.0
    %268 = vmatpush1.msra.mxu0 0.0
    %269 = vmatprep.subr.mxu0 0.0
    %270 = vmatpush1.msra.mxu0 0.0
    %271 = vmatprep.subr.mxu0 0.0
    %272 = vmatpush1.msra.mxu0 0.0
    %273 = vmatprep.subr.mxu0 0.0
    %274 = vmatpush1.msra.mxu0 0.0
    %275 = vmatprep.subr.mxu0 0.0
    %276 = vmatpush1.msra.mxu0 0.0
    %277 = vmatprep.subr.mxu0 0.0
    %278 = vmatpush1.msra.mxu0 0.0
    %279 = vmatprep.subr.mxu0 0.0
    %280 = vmatpush1.msra.mxu0 0.0
    %281 = vmatprep.subr.mxu0 0.0
    %282 = vmatpush1.msra.mxu0 0.0
    %283 = vmatprep.subr.mxu0 0.0
    %284 = vmatpush1.msra.mxu0 0.0
    %285 = vmatprep.subr.mxu0 0.0
    %286 = vmatpush1.msra.mxu0 0.0
    %287 = vmatprep.subr.mxu0 0.0
    %288 = vmatpush1.msra.mxu0 0.0
    %289 = vmatprep.subr.mxu0 0.0
    %290 = vmatpush1.msra.mxu0 0.0
    %291 = vmatprep.subr.mxu0 0.0
    %292 = vmatpush1.msra.mxu0 0.0
    %293 = vmatprep.subr.mxu0 0.0
    %294 = vmatpush1.msra.mxu0 0.0
    %295 = vmatprep.subr.mxu0 0.0
    %296 = vmatpush1.msra.mxu0 0.0
    %297 = vmatprep.subr.mxu0 0.0
    %298 = vmatpush1.msra.mxu0 0.0
    %299 = vmatprep.subr.mxu0 0.0
    %300 = vmatpush1.msra.mxu0 0.0
    %301 = vmatprep.subr.mxu0 0.0
    %302 = vmatpush1.msra.mxu0 0.0
    %303 = vmatprep.subr.mxu0 0.0
    %304 = vmatpush1.msra.mxu0 0.0
    %305 = vmatprep.subr.mxu0 0.0
    %306 = vmatpush1.msra.mxu0 0.0
    %307 = vmatprep.subr.mxu0 0.0
    %308 = vmatpush1.msra.mxu0 0.0
    %309 = vmatprep.subr.mxu0 0.0
    %310 = vmatpush1.msra.mxu0 0.0
    %311 = vmatprep.subr.mxu0 0.0
    %312 = vmatpush1.msra.mxu0 0.0
    %313 = vmatprep.subr.mxu0 0.0
    %314 = vmatpush1.msra.mxu0 0.0
    %315 = vmatprep.mubr.f32.mxu0 0.0
    %316 = vmatmul.mubr.f32.gmra.mrb[0].mxu0 %v237
    %v317 = vpop.f32.mrb[0].mxu0
    %v318 = vadd.f32 0.0, %v317
    %v319 = vpop.f32.mrb[0].mxu0
    %320 = vmatprep.mubr.f32.mxu0 0.0
    %321 = vmatmul.mubr.f32.gmra.mrb[0].mxu0 %v240
    %v322 = vpop.f32.mrb[0].mxu0
    %v323 = vadd.f32 0.0, %v322
    %v324 = vpop.f32.mrb[0].mxu0
    %325 = vmatprep.mubr.f32.mxu0 0.0
    %326 = vmatmul.mubr.f32.gmra.mrb[0].mxu0 %v243
    %v327 = vpop.f32.mrb[0].mxu0
    %v328 = vadd.f32 0.0, %v327
    %v329 = vpop.f32.mrb[0].mxu0
    %330 = vmatprep.mubr.f32.mxu0 0.0
    %331 = vmatmul.mubr.f32.gmra.mrb[0].mxu0 %v246
    %v332 = vpop.f32.mrb[0].mxu0
    %v333 = vadd.f32 0.0, %v332
    %v334 = vpop.f32.mrb[0].mxu0
    %335 = vdwg.mxu0
    %v336 = vld [vmem:[%s5] sm:$0xff]
    %v337 = vmul.f32 %v318, %v24
    %v338 = vmul.f32 %v323, %v25
    %v339 = vmul.f32 %v328, %v26
    %v340 = vmul.f32 %v333, %v27
    %v342 = vsel %vm136, %v336, 0
    %344 = vmatprep.subr.mxu0 0.0
    %345 = vmatpush1.msra.mxu0 %v337
    %346 = vmatprep.subr.mxu0 0.0
    %347 = vmatpush1.msra.mxu0 %v338
    %348 = vmatprep.subr.mxu0 0.0
    %349 = vmatpush1.msra.mxu0 %v339
    %350 = vmatprep.subr.mxu0 0.0
    %351 = vmatpush1.msra.mxu0 %v340
    %352 = vmatprep.subr.mxu0 0.0
    %353 = vmatpush1.msra.mxu0 0.0
    %354 = vmatprep.subr.mxu0 0.0
    %355 = vmatpush1.msra.mxu0 0.0
    %356 = vmatprep.subr.mxu0 0.0
    %357 = vmatpush1.msra.mxu0 0.0
    %358 = vmatprep.subr.mxu0 0.0
    %359 = vmatpush1.msra.mxu0 0.0
    %360 = vmatprep.subr.mxu0 0.0
    %361 = vmatpush1.msra.mxu0 0.0
    %362 = vmatprep.subr.mxu0 0.0
    %363 = vmatpush1.msra.mxu0 0.0
    %364 = vmatprep.subr.mxu0 0.0
    %365 = vmatpush1.msra.mxu0 0.0
    %366 = vmatprep.subr.mxu0 0.0
    %367 = vmatpush1.msra.mxu0 0.0
    %368 = vmatprep.subr.mxu0 0.0
    %369 = vmatpush1.msra.mxu0 0.0
    %370 = vmatprep.subr.mxu0 0.0
    %371 = vmatpush1.msra.mxu0 0.0
    %372 = vmatprep.subr.mxu0 0.0
    %373 = vmatpush1.msra.mxu0 0.0
    %374 = vmatprep.subr.mxu0 0.0
    %375 = vmatpush1.msra.mxu0 0.0
    %376 = vmatprep.subr.mxu0 0.0
    %377 = vmatpush1.msra.mxu0 0.0
    %378 = vmatprep.subr.mxu0 0.0
    %379 = vmatpush1.msra.mxu0 0.0
    %380 = vmatprep.subr.mxu0 0.0
    %381 = vmatpush1.msra.mxu0 0.0
    %382 = vmatprep.subr.mxu0 0.0
    %383 = vmatpush1.msra.mxu0 0.0
    %384 = vmatprep.subr.mxu0 0.0
    %385 = vmatpush1.msra.mxu0 0.0
    %386 = vmatprep.subr.mxu0 0.0
    %387 = vmatpush1.msra.mxu0 0.0
    %388 = vmatprep.subr.mxu0 0.0
    %389 = vmatpush1.msra.mxu0 0.0
    %390 = vmatprep.subr.mxu0 0.0
    %391 = vmatpush1.msra.mxu0 0.0
    %392 = vmatprep.subr.mxu0 0.0
    %393 = vmatpush1.msra.mxu0 0.0
    %394 = vmatprep.subr.mxu0 0.0
    %395 = vmatpush1.msra.mxu0 0.0
    %396 = vmatprep.subr.mxu0 0.0
    %397 = vmatpush1.msra.mxu0 0.0
    %398 = vmatprep.subr.mxu0 0.0
    %399 = vmatpush1.msra.mxu0 0.0
    %400 = vmatprep.subr.mxu0 0.0
    %401 = vmatpush1.msra.mxu0 0.0
    %402 = vmatprep.subr.mxu0 0.0
    %403 = vmatpush1.msra.mxu0 0.0
    %404 = vmatprep.subr.mxu0 0.0
    %405 = vmatpush1.msra.mxu0 0.0
    %406 = vmatprep.subr.mxu0 0.0
    %407 = vmatpush1.msra.mxu0 0.0
    %408 = vmatprep.mubr.f32.mxu0 0.0
    %409 = vmatmul.mubr.f32.gmra.mrb[0].mxu0 %v342
    %v410 = vpop.f32.mrb[0].mxu0
    %v411 = vadd.f32 0.0, %v410
    %v412 = vpop.f32.mrb[0].mxu0
    %413 = vdwg.mxu0
    %414 = vst [vmem:[#allocation2] sm:$0xff] %v411
    // Predicated region
    $region26: #{tpu_custom_call.1} parent=1 // pred_check
      _
    $region27: #{tpu_custom_call.1} parent=1 // pred_check_branch
      %416 = sbr.rel (0) target = $region29
    $region28: #{tpu_custom_call.1} parent=1 // pred_region
      %s418 = ssub.s32 128, 128
      %419 = vsyncadd [#allocation3], %s418
      %s421 = sshll.u32 [#allocation2], 4
      %s422 = int_to_ptr.vmem [resolvable:$true] %s421
      %424 = dma.vmem_to_hbm [thread:$0]  %s422, 128, %s6, [#allocation3]
    $region29: #{tpu_custom_call.1} parent=1 // pred_fallthru
      _
    // Predicated region
    $region30: #{tpu_custom_call.1} parent=1 // pred_check
      _
    $region31: #{tpu_custom_call.1} parent=1 // pred_check_branch
      %426 = sbr.rel (0) target = $region33
    $region32: #{tpu_custom_call.1} parent=1 // pred_region
      %427 = dma.done [#allocation3], 128
    $region33: #{tpu_custom_call.1} parent=1 // pred_fallthru
      _
    %428 = vsyncpa [#allocation3], 1

</llo_original>
